<compile_context>
chip_gen: v6e
topology: v6e:2x2x1
jax: 0.10.0
libtpu: 0.0.40
codegen_flags: <defaults>
</compile_context>

<pallas_src>
import jax
import jax.numpy as jnp
from jax.experimental import pallas as pl
from jax.experimental.pallas import tpu as pltpu

B = 8        # batch
IN = 16      # linear1 in_features
H = 1        # hidden_size
OUT = 1      # linear2 out_features

# The SMEM scalar path below assumes both layer widths are 1 (b1, w2, b2 are
# treated as scalars).  Fail loudly if the config ever changes.
assert H == 1 and OUT == 1, "kernel assumes hidden_size == out_features == 1"


def _mlp_sigmoid_kernel(x_ref, w1_ref, b1_ref, w2_ref, b2_ref, o_ref):
    # x_ref:  VMEM f32[B, IN]
    # w1_ref: VMEM f32[H, IN] == [1, IN]
    # b1_ref: SMEM f32[H]      -> scalar
    # w2_ref: SMEM f32[OUT, H] -> scalar
    # b2_ref: SMEM f32[OUT]    -> scalar
    # o_ref:  VMEM f32[OUT, B]  (lane-dense: batch on the 128-lane axis)
    x = x_ref[...]                                   # [B, IN]
    w1 = w1_ref[...]                                 # [1, IN] (broadcasts over rows)
    b1 = b1_ref[0]
    w2 = w2_ref[0, 0]
    b2 = b2_ref[0]

    # linear1: per-row dot product -> VPU multiply + XLU lane reduce (no MXU).
    l1 = jnp.sum(x * w1, axis=1) + b1                # [B]
    # linear2: scalar FMA (pure VPU).
    l2 = l1 * w2 + b2                                # [B]
    # sigmoid(l1) * sigmoid(l2) fused into one exact reciprocal (halves the
    # EUP divide traffic; exact so the 1e-5 reference check holds).
    denom = (1.0 + jnp.exp(-l1)) * (1.0 + jnp.exp(-l2))
    out = pl.reciprocal(denom)                       # [B], exact
    o_ref[...] = out[None, :].astype(o_ref.dtype)    # [OUT, B] lane-dense store


def mlp_sigmoid(x, w1, b1, w2, b2):
    # No wrapper-side packing / transposes: x and w1 go to VMEM as-is, the
    # three width-1 parameters go to SMEM as-is.  The (OUT, B) kernel output
    # is a contiguous reshape away from PyTorch's (B, OUT).
    out_t = pl.pallas_call(
        _mlp_sigmoid_kernel,
        out_shape=jax.ShapeDtypeStruct((OUT, x.shape[0]), jnp.float32),
        in_specs=[
            pl.BlockSpec(memory_space=pltpu.MemorySpace.VMEM),   # x
            pl.BlockSpec(memory_space=pltpu.MemorySpace.VMEM),   # w1
            pl.BlockSpec(memory_space=pltpu.MemorySpace.SMEM),   # b1
            pl.BlockSpec(memory_space=pltpu.MemorySpace.SMEM),   # w2
            pl.BlockSpec(memory_space=pltpu.MemorySpace.SMEM),   # b2
        ],
        out_specs=pl.BlockSpec(memory_space=pltpu.MemorySpace.VMEM),
    )(x, w1, b1, w2, b2)
    return out_t.reshape(x.shape[0], OUT)


def init_params(key):
    # Deterministic init mimicking PyTorch Linear defaults
    # (uniform +/- 1/sqrt(fan_in)), with PyTorch-native parameter shapes.
    k1, k2, k3, k4 = jax.random.split(key, 4)
    bound1 = 1.0 / jnp.sqrt(IN)
    bound2 = 1.0 / jnp.sqrt(H)
    w1 = jax.random.uniform(k1, (H, IN), jnp.float32, -bound1, bound1)
    b1 = jax.random.uniform(k2, (H,), jnp.float32, -bound1, bound1)
    w2 = jax.random.uniform(k3, (OUT, H), jnp.float32, -bound2, bound2)
    b2 = jax.random.uniform(k4, (OUT,), jnp.float32, -bound2, bound2)
    return w1, b1, w2, b2


if __name__ == "__main__":
    key = jax.random.PRNGKey(0)
    kx, kp = jax.random.split(key)
    x = jax.random.normal(kx, (B, IN), jnp.float32)
    w1, b1, w2, b2 = init_params(kp)

    out = mlp_sigmoid(x, w1, b1, w2, b2)
    jax.block_until_ready(out)

    # Reference in plain JAX (PyTorch Linear semantics: x @ W^T + b).
    l1 = x @ w1.T + b1
    l2 = l1 @ w2.T + b2
    ref = jax.nn.sigmoid(l1) * jax.nn.sigmoid(l2)
    assert out.shape == (B, OUT)
    assert jnp.allclose(out, ref, atol=1e-5, rtol=1e-5), "mismatch vs reference"

    print("KERNEL_OK")
</pallas_src>

<mosaic_0001>
module attributes {stable_mosaic.version = 11 : i64} {
  func.func @_mlp_sigmoid_kernel(%arg0: memref<8x16xf32, #tpu.memory_space<vmem>>, %arg1: memref<1x16xf32, #tpu.memory_space<vmem>>, %arg2: memref<1xf32, #tpu.memory_space<smem>>, %arg3: memref<1x1xf32, #tpu.memory_space<smem>>, %arg4: memref<1xf32, #tpu.memory_space<smem>>, %arg5: memref<1x8xf32, #tpu.memory_space<vmem>>) attributes {dimension_semantics = [], scalar_prefetch = 0 : i64, scratch_operands = 0 : i64, tpu.core_type = #tpu.core_type<tc>} {
    %c0 = arith.constant 0 : index
    %c0_0 = arith.constant 0 : index
    %0 = vector.load %arg0[%c0, %c0_0] : memref<8x16xf32, #tpu.memory_space<vmem>>, vector<8x16xf32>
    %c0_1 = arith.constant 0 : index
    %c0_2 = arith.constant 0 : index
    %1 = vector.load %arg1[%c0_1, %c0_2] : memref<1x16xf32, #tpu.memory_space<vmem>>, vector<1x16xf32>
    %c0_3 = arith.constant 0 : index
    %2 = memref.load %arg2[%c0_3] : memref<1xf32, #tpu.memory_space<smem>>
    %c0_4 = arith.constant 0 : index
    %c0_5 = arith.constant 0 : index
    %3 = memref.load %arg3[%c0_4, %c0_5] : memref<1x1xf32, #tpu.memory_space<smem>>
    %c0_6 = arith.constant 0 : index
    %4 = memref.load %arg4[%c0_6] : memref<1xf32, #tpu.memory_space<smem>>
    %5 = vector.broadcast %1 : vector<1x16xf32> to vector<8x16xf32>
    %6 = arith.mulf %0, %5 : vector<8x16xf32>
    %cst = arith.constant dense<0.000000e+00> : vector<8xf32>
    %7 = vector.multi_reduction <add>, %6, %cst [1] : vector<8x16xf32> to vector<8xf32>
    %8 = vector.broadcast %2 : f32 to vector<8xf32>
    %9 = arith.addf %7, %8 : vector<8xf32>
    %10 = vector.broadcast %3 : f32 to vector<8xf32>
    %11 = arith.mulf %9, %10 : vector<8xf32>
    %12 = vector.broadcast %4 : f32 to vector<8xf32>
    %13 = arith.addf %11, %12 : vector<8xf32>
    %cst_7 = arith.constant 0.000000e+00 : f32
    %14 = vector.broadcast %cst_7 : f32 to vector<8xf32>
    %15 = arith.subf %14, %9 : vector<8xf32>
    %16 = math.exp %15 : vector<8xf32>
    %cst_8 = arith.constant 1.000000e+00 : f32
    %17 = vector.broadcast %cst_8 : f32 to vector<8xf32>
    %18 = arith.addf %17, %16 : vector<8xf32>
    %cst_9 = arith.constant 0.000000e+00 : f32
    %19 = vector.broadcast %cst_9 : f32 to vector<8xf32>
    %20 = arith.subf %19, %13 : vector<8xf32>
    %21 = math.exp %20 : vector<8xf32>
    %cst_10 = arith.constant 1.000000e+00 : f32
    %22 = vector.broadcast %cst_10 : f32 to vector<8xf32>
    %23 = arith.addf %22, %21 : vector<8xf32>
    %24 = arith.mulf %18, %23 : vector<8xf32>
    %25 = tpu.reciprocal %24 : vector<8xf32> -> vector<8xf32>
    %26 = vector.shape_cast %25 : vector<8xf32> to vector<1x8xf32>
    %c0_11 = arith.constant 0 : index
    %c0_12 = arith.constant 0 : index
    %27 = vector.load %arg5[%c0_11, %c0_12] : memref<1x8xf32, #tpu.memory_space<vmem>>, vector<1x8xf32>
    tpu.vector_store %arg5[%c0_11, %c0_12], %26 {strides = array<i32>} : memref<1x8xf32, #tpu.memory_space<vmem>>, vector<1x8xf32>,
    return
  }
}

</mosaic_0001>

<llo_original>
// kernel: tpu_custom_call.1
$region0: #{tpu_custom_call.1}
  #allocation0 [shape = 'u32[]', space=smem, size = 0x4, offset = 0x4, fixed_abs, tag = 'smem constant byte address 0x4 - core index']
  #allocation1 [shape = 'u32[144,128]{1,0:T(1,128)}', space=vmem, size = 0x12000, scoped, tag = 'internal scratch']
  #allocation2 [shape = 'f32[1]{0:T(128)S(6)}', space=smem, size = 0x200, scoped, tag = 'scoped memory for tpu_custom_call.1']
  #allocation3 [shape = 'f32[1,1]{1,0:T(1,128)S(6)}', space=smem, size = 0x200, scoped, tag = 'scoped memory for tpu_custom_call.1']
  #allocation4 [shape = 'f32[1]{0:T(128)S(6)}', space=smem, size = 0x200, scoped, tag = 'scoped memory for tpu_custom_call.1']
  %s0 = inlined_call_operand.hbm [shape: f32[8,16], index: 0, kind: input, shape index: {}]
  %s1 = inlined_call_operand.vmem [shape: f32[1,16], index: 1, kind: input, shape index: {}]
  %s2 = inlined_call_operand.<no memory space> [shape: f32[1], index: 2, kind: input, shape index: {}]
  %s3 = inlined_call_operand.<no memory space> [shape: f32[1,1], index: 3, kind: input, shape index: {}]
  %s4 = inlined_call_operand.<no memory space> [shape: f32[1], index: 4, kind: input, shape index: {}]
  %s5 = inlined_call_operand.hbm [shape: f32[1,8], index: 5, kind: output, shape index: {}]
  %s6 = sld [smem:[#allocation0]]
  $region34: #{tpu_custom_call.1} parent=0
    _
  %s8 = ssub.s32 1, %s6
  %s9 = scalar_select 0, %s8, %s6
  %10 = sst [smem:[#allocation2]] %s2
  %11 = sst [smem:[#allocation3]] %s3
  %12 = sst [smem:[#allocation4]] %s4
  $region1: #{tpu_custom_call.1} parent=0
    #allocation5 [shape = 'u8[4096]{0}', space=vmem, size = 0x1000, scoped, tag = 'input window, operand 0, single buffered']
    #allocation6 [shape = 's32[1]{0}', space=sflag, size = 0x4, scoped, tag = 'scoped memory for tpu_custom_call.1']
    #allocation7 [shape = 's32[1]{0}', space=sflag, size = 0x4, scoped, tag = 'scoped memory for tpu_custom_call.1']
    #allocation8 [shape = 'u8[512]{0}', space=vmem, size = 0x400, scoped, tag = 'output window, operand 0, single buffered']
    %13 = vsyncpa [#allocation6], 0
    %14 = vsyncpa [#allocation7], 0
    // Predicated region
    $region2: #{tpu_custom_call.1} parent=1 // pred_check
      _
    $region3: #{tpu_custom_call.1} parent=1 // pred_check_branch
      %16 = sbr.rel (0) target = $region5
    $region4: #{tpu_custom_call.1} parent=1 // pred_region
      %s18 = ssub.s32 128, 128
      %19 = vsyncadd [#allocation6], %s18
      %s21 = sshll.u32 [#allocation5], 4
      %s22 = int_to_ptr.vmem [resolvable:$true] %s21
      %24 = dma.hbm_to_vmem [thread:$0]  %s0, 128, %s22, [#allocation6]
    $region5: #{tpu_custom_call.1} parent=1 // pred_fallthru
      _
    // Predicated region
    $region6: #{tpu_custom_call.1} parent=1 // pred_check
      _
    $region7: #{tpu_custom_call.1} parent=1 // pred_check_branch
      %26 = sbr.rel (0) target = $region9
    $region8: #{tpu_custom_call.1} parent=1 // pred_region
      _
    $region9: #{tpu_custom_call.1} parent=1 // pred_fallthru
      _
    // Predicated region
    $region10: #{tpu_custom_call.1} parent=1 // pred_check
      _
    $region11: #{tpu_custom_call.1} parent=1 // pred_check_branch
      %28 = sbr.rel (0) target = $region13
    $region12: #{tpu_custom_call.1} parent=1 // pred_region
      _
    $region13: #{tpu_custom_call.1} parent=1 // pred_fallthru
      _
    // Predicated region
    $region14: #{tpu_custom_call.1} parent=1 // pred_check
      _
    $region15: #{tpu_custom_call.1} parent=1 // pred_check_branch
      %30 = sbr.rel (0) target = $region17
    $region16: #{tpu_custom_call.1} parent=1 // pred_region
      _
    $region17: #{tpu_custom_call.1} parent=1 // pred_fallthru
      _
    // Predicated region
    $region18: #{tpu_custom_call.1} parent=1 // pred_check
      _
    $region19: #{tpu_custom_call.1} parent=1 // pred_check_branch
      %32 = sbr.rel (0) target = $region21
    $region20: #{tpu_custom_call.1} parent=1 // pred_region
      _
    $region21: #{tpu_custom_call.1} parent=1 // pred_fallthru
      _
    // Predicated region
    $region22: #{tpu_custom_call.1} parent=1 // pred_check
      _
    $region23: #{tpu_custom_call.1} parent=1 // pred_check_branch
      %34 = sbr.rel (0) target = $region25
    $region24: #{tpu_custom_call.1} parent=1 // pred_region
      %35 = dma.done [#allocation6], 128
    $region25: #{tpu_custom_call.1} parent=1 // pred_fallthru
      _
    %v36 = vld [vmem:[#allocation5] sm:$0xff]
    %v37 = vld [vmem:[%s1] sm:$0x1]
    %s38 = sld [smem:[#allocation2]]
    %s39 = sld [smem:[#allocation3]]
    %s40 = sld [smem:[#allocation4]]
    %v42 = vlaneseq
    %v43 = vshrl.u32 %v42, 7
    %v44 = vsub.s32 0, %v43
    %v45 = vrot.slane %v37, %v44
    %v47 = vmul.f32 %v36, %v45
    %vm48 = vcmask 130048
    %v49 = vsel %vm48, %v47, 0.0
    %50 = vadd.xlane.f32.xlu0 %v49
    %v51 = vpop.xlane.xlu0 %50
    %v52 = vstv %s38
    %v53 = vadd.f32 %v51, %v52
    %v54 = vstv %s39
    %v55 = vmul.f32 %v53, %v54
    %v56 = vstv %s40
    %v57 = vadd.f32 %v55, %v56
    %v58 = vsub.f32 0.0, %v53
    %v59 = vmul.f32 %v58, 1.442695
    %v60 = vpow.pop %v59
    %v61 = vadd.f32 %v60, 1.0
    %v62 = vsub.f32 0.0, %v57
    %v63 = vmul.f32 %v62, 1.442695
    %v64 = vpow.pop %v63
    %v65 = vadd.f32 %v64, 1.0
    %v66 = vmul.f32 %v61, %v65
    %v67 = vrcp.pop %v66
    %v69 = vlaneseq
    %v70 = vand.u32 %v69, 127
    %v71 = vlaneseq
    %v72 = vshrl.u32 %v71, 7
    %v73 = vsub.s32 %v70, %v72
    %v74 = vrot.slane %v67, %v73
    %vm76 = vcmask 57344
    %77 = vst.msk [vmem:[#allocation8] sm:$0x1] %vm76, %v74
    // Predicated region
    $region26: #{tpu_custom_call.1} parent=1 // pred_check
      _
    $region27: #{tpu_custom_call.1} parent=1 // pred_check_branch
      %79 = sbr.rel (0) target = $region29
    $region28: #{tpu_custom_call.1} parent=1 // pred_region
      %s81 = ssub.s32 16, 16
      %82 = vsyncadd [#allocation7], %s81
      %s84 = sshll.u32 [#allocation8], 4
      %s85 = int_to_ptr.vmem [resolvable:$true] %s84
      %87 = dma.vmem_to_hbm [thread:$0]  %s85, 16, %s5, [#allocation7]
    $region29: #{tpu_custom_call.1} parent=1 // pred_fallthru
      _
    // Predicated region
    $region30: #{tpu_custom_call.1} parent=1 // pred_check
      _
    $region31: #{tpu_custom_call.1} parent=1 // pred_check_branch
      %89 = sbr.rel (0) target = $region33
    $region32: #{tpu_custom_call.1} parent=1 // pred_region
      %90 = dma.done [#allocation7], 16
    $region33: #{tpu_custom_call.1} parent=1 // pred_fallthru
      _
    %91 = vsyncpa [#allocation6], 1
    %92 = vsyncpa [#allocation7], 1

</llo_original>
